<compile_context>
chip_gen: v7x
topology: tpu7x:2x2x1
jax: 0.10.0
libtpu: 0.0.40
codegen_flags: <defaults>
</compile_context>

<pallas_src>
import functools
import inspect

import jax
import jax.numpy as jnp
import numpy as np
from jax.experimental import pallas as pl
from jax.experimental.pallas import tpu as pltpu


EPS = 1e-6
LANE = 128


# ----------------------------- config (small) -------------------------------
class SmallMlaConfig:
    hidden_size = 256
    num_attention_heads = 4
    qk_nope_head_dim = 128
    qk_rope_head_dim = 64
    v_head_dim = 128
    q_lora_rank = 128
    kv_lora_rank = 128
    attention_bias = False


# --------------------------------- helpers ----------------------------------
def _round_up(x, m):
    return ((x + m - 1) // m) * m


def _vmem_capacity_bytes():
    try:
        return int(pltpu.get_tpu_info().vmem_capacity_bytes)
    except Exception:
        return 64 << 20  # conservative (v7x-sized) fallback


def _single_buffer_kwargs():
    # Single-buffer grid-invariant weight blocks when supported (halves their
    # VMEM footprint).  Guarded so older jax builds still run with the default
    # double-buffering.
    try:
        if "pipeline_mode" in inspect.signature(pl.BlockSpec).parameters:
            return {"pipeline_mode": pl.Buffered(1)}
    except Exception:
        pass
    return {}


def _sublane_pack(dtype):
    # Rows per packed sublane group: 8 for f32, 16 for bf16, 32 for int8/fp8.
    return 8 * max(1, 4 // jnp.dtype(dtype).itemsize)


def _pick_tile_m(M, dtype, vmem_cap):
    pack = _sublane_pack(dtype)
    target = 512 if vmem_cap >= (96 << 20) else 256   # v5e/v6e vs v7x
    tile_m = int(min(target, _round_up(M, pack)))
    # Give megacore (v7x: 2 TCs) at least two parallel M steps when possible.
    if _round_up(M, tile_m) // tile_m < 2 and M > pack:
        tile_m = int(max(pack, _round_up((M + 1) // 2, pack)))
    return tile_m


def _pick_tile_n(N, max_tile=1024):
    if N <= max_tile:
        return int(N)
    for t in (max_tile, 512, 256, 128):
        if N % t == 0:
            return int(t)
    return int(N)


def _vmem_limit(bytes_needed, vmem_cap):
    return int(min(max(bytes_needed * 5 // 4, 32 << 20), vmem_cap))


# ------------------------ kernel 1: a-proj + RMSNorms ------------------------
def _a_proj_norm_kernel(x_ref, wa_ref, qa_ln_ref, kva_ln_ref,
                        qa_ref, ckv_ref, kpe_ref, *, q_lora, kv_lora):
    x = x_ref[...]  # native dtype straight to the MXU
    a = jnp.dot(x, wa_ref[...], preferred_element_type=jnp.float32)

    qa = a[:, :q_lora]
    ckv = a[:, q_lora:q_lora + kv_lora]
    kpe = a[:, q_lora + kv_lora:]      # already 128-lane wide (host-side pad)

    # RMSNorm in f32; k_pe bypasses the norm (as in the reference module).
    qa_n = qa * jax.lax.rsqrt(jnp.mean(qa * qa, axis=-1, keepdims=True) + EPS)
    qa_n = qa_n * qa_ln_ref[0]
    ckv_n = ckv * jax.lax.rsqrt(jnp.mean(ckv * ckv, axis=-1, keepdims=True) + EPS)
    ckv_n = ckv_n * kva_ln_ref[0]

    # Direct, lane-dense stores (no concatenates on the store path).
    qa_ref[...] = qa_n.astype(qa_ref.dtype)
    ckv_ref[...] = ckv_n.astype(ckv_ref.dtype)
    kpe_ref[...] = kpe.astype(kpe_ref.dtype)


def _a_proj_norm(x2d, wa_fused, qa_ln, kva_ln, *, q_lora, kv_lora, rope_pad,
                 tile_m, vmem_cap):
    m_pad, hidden = x2d.shape
    assert m_pad % tile_m == 0
    grid = (m_pad // tile_m,)
    sb = _single_buffer_kwargs()
    wbuf = 1 if sb else 2

    act_isz = jnp.dtype(x2d.dtype).itemsize
    bytes_needed = (
        2 * tile_m * hidden * act_isz
        + wbuf * (wa_fused.size * wa_fused.dtype.itemsize
                  + qa_ln.size * qa_ln.dtype.itemsize
                  + kva_ln.size * kva_ln.dtype.itemsize)
        + 2 * tile_m * (q_lora + kv_lora + rope_pad) * act_isz)

    kernel = functools.partial(_a_proj_norm_kernel,
                               q_lora=q_lora, kv_lora=kv_lora)

    return pl.pallas_call(
        kernel,
        out_shape=(
            jax.ShapeDtypeStruct((m_pad, q_lora), x2d.dtype),
            jax.ShapeDtypeStruct((m_pad, kv_lora), x2d.dtype),
            jax.ShapeDtypeStruct((m_pad, rope_pad), x2d.dtype),
        ),
        grid=grid,
        in_specs=[
            pl.BlockSpec((tile_m, hidden), lambda m: (m, 0)),
            pl.BlockSpec(wa_fused.shape, lambda m: (0, 0), **sb),
            pl.BlockSpec(qa_ln.shape, lambda m: (0, 0), **sb),
            pl.BlockSpec(kva_ln.shape, lambda m: (0, 0), **sb),
        ],
        out_specs=[
            pl.BlockSpec((tile_m, q_lora), lambda m: (m, 0)),
            pl.BlockSpec((tile_m, kv_lora), lambda m: (m, 0)),
            pl.BlockSpec((tile_m, rope_pad), lambda m: (m, 0)),
        ],
        compiler_params=pltpu.CompilerParams(
            dimension_semantics=("parallel",),
            vmem_limit_bytes=_vmem_limit(bytes_needed, vmem_cap)),
    )(x2d, wa_fused, qa_ln, kva_ln)


# -------------------- kernel 2/3: N-tiled b-projection GEMM ------------------
def _bproj_kernel(a_ref, w_ref, o_ref):
    o_ref[...] = jnp.dot(a_ref[...], w_ref[...],
                         preferred_element_type=jnp.float32).astype(o_ref.dtype)


def _b_proj(a2d, w, *, tile_m, vmem_cap):
    m_pad, K = a2d.shape
    k2, N = w.shape
    assert K == k2 and N % LANE == 0 and m_pad % tile_m == 0
    tile_n = _pick_tile_n(N)
    # n outer / m inner: the weight column-block index only depends on n, so it
    # is DMA'd once and reused across all M tiles (weights stream, not reside).
    grid = (N // tile_n, m_pad // tile_m)

    act_isz = jnp.dtype(a2d.dtype).itemsize
    w_isz = jnp.dtype(w.dtype).itemsize
    bytes_needed = 2 * (tile_m * K * act_isz + K * tile_n * w_isz
                        + tile_m * tile_n * act_isz)

    return pl.pallas_call(
        _bproj_kernel,
        out_shape=jax.ShapeDtypeStruct((m_pad, N), a2d.dtype),
        grid=grid,
        in_specs=[
            pl.BlockSpec((tile_m, K), lambda n, m: (m, 0)),
            pl.BlockSpec((K, tile_n), lambda n, m: (0, n)),
        ],
        out_specs=pl.BlockSpec((tile_m, tile_n), lambda n, m: (m, n)),
        compiler_params=pltpu.CompilerParams(
            dimension_semantics=("parallel", "parallel"),
            vmem_limit_bytes=_vmem_limit(bytes_needed, vmem_cap)),
    )(a2d, w)


# ------------------------------ JAX glue (layout) ----------------------------
def _deepseek_transpose(x):
    # x: (b, h, s, d) -> even-indexed elems first, then odd-indexed elems.
    b, h, s, d = x.shape
    return (x.reshape(b, h, s, d // 2, 2)
             .transpose(0, 1, 2, 4, 3)
             .reshape(b, h, s, d))


def mla_qkv_gemm(x, params, cfg):
    B, S, hidden = x.shape
    H = cfg.num_attention_heads
    nope = cfg.qk_nope_head_dim
    rope = cfg.qk_rope_head_dim
    vdim = cfg.v_head_dim
    q_head_dim = nope + rope
    q_lora = cfg.q_lora_rank
    kv_lora = cfg.kv_lora_rank
    rope_pad = _round_up(rope, LANE)

    # Lane-alignment assumptions (hold for both test and production configs).
    assert hidden % LANE == 0 and q_lora % LANE == 0 and kv_lora % LANE == 0
    assert (H * q_head_dim) % LANE == 0 and (H * (nope + vdim)) % LANE == 0

    # Fuse both a-projection weights; pad the rope slice with zero columns so
    # the fused a-GEMM emits kpe already 128-lane wide (no in-kernel padding).
    wa_parts = [params["wqa_t"], params["wkva_t"]]
    if rope_pad > rope:
        wa_parts.append(
            jnp.zeros((hidden, rope_pad - rope), params["wkva_t"].dtype))
    wa_fused = jnp.concatenate(wa_parts, axis=1)

    M = B * S
    vmem_cap = int(_vmem_capacity_bytes() * 0.8)
    tile_m = _pick_tile_m(M, x.dtype, vmem_cap)
    m_pad = _round_up(M, tile_m)

    x2d = x.reshape(M, hidden)
    if m_pad != M:
        x2d = jnp.pad(x2d, ((0, m_pad - M), (0, 0)))

    # Call 1: fused a-projection + both RMSNorms.
    qa_n, ckv_n, kpe_flat = _a_proj_norm(
        x2d, wa_fused, params["qa_ln"], params["kva_ln"],
        q_lora=q_lora, kv_lora=kv_lora, rope_pad=rope_pad,
        tile_m=tile_m, vmem_cap=vmem_cap)

    # Calls 2/3: N-tiled b-projections with weight reuse across M tiles.
    q_flat = _b_proj(qa_n, params["wqb_t"], tile_m=tile_m, vmem_cap=vmem_cap)
    kv_flat = _b_proj(ckv_n, params["wkvb_t"], tile_m=tile_m, vmem_cap=vmem_cap)

    q_flat = q_flat[:M]
    kv_flat = kv_flat[:M]
    kpe_flat = kpe_flat[:M, :rope]

    # ---- layout plumbing (plain JAX) ----
    q = q_flat.reshape(B, S, H, q_head_dim).transpose(0, 2, 1, 3)
    q_nope, q_pe = q[..., :nope], q[..., nope:]

    k_pe = kpe_flat.reshape(B, S, 1, rope).transpose(0, 2, 1, 3)

    kv = kv_flat.reshape(B, S, H, nope + vdim).transpose(0, 2, 1, 3)
    k_nope, value_states = kv[..., :nope], kv[..., nope:]

    q_pe = _deepseek_transpose(q_pe)
    k_pe = jnp.broadcast_to(_deepseek_transpose(k_pe), (B, H, S, rope))

    query_states = jnp.concatenate([q_nope, q_pe], axis=-1)
    key_states = jnp.concatenate([k_nope, k_pe], axis=-1)
    value_full = jnp.concatenate(
        [value_states, jnp.zeros((B, H, S, q_head_dim - vdim), x.dtype)],
        axis=-1)

    return jnp.concatenate([query_states, key_states, value_full], axis=1)


# ------------------------------ pure-JAX reference ---------------------------
def _reference(x, params, cfg):
    def rmsnorm(h, w):
        var = jnp.mean(h.astype(jnp.float32) ** 2, axis=-1, keepdims=True)
        return w * (h * jax.lax.rsqrt(var + EPS))

    B, S, _ = x.shape
    H = cfg.num_attention_heads
    nope, rope, vdim = cfg.qk_nope_head_dim, cfg.qk_rope_head_dim, cfg.v_head_dim
    q_head_dim = nope + rope

    qa = x @ params["wqa_t"]
    q = rmsnorm(qa, params["qa_ln"][0]) @ params["wqb_t"]
    q = q.reshape(B, S, H, q_head_dim).transpose(0, 2, 1, 3)
    q_nope, q_pe = q[..., :nope], q[..., nope:]

    kva = x @ params["wkva_t"]
    ckv, kpe = kva[..., :cfg.kv_lora_rank], kva[..., cfg.kv_lora_rank:]
    k_pe = kpe.reshape(B, S, 1, rope).transpose(0, 2, 1, 3)
    kv = (rmsnorm(ckv, params["kva_ln"][0]) @ params["wkvb_t"]).reshape(
        B, S, H, nope + vdim).transpose(0, 2, 1, 3)
    k_nope, v_st = kv[..., :nope], kv[..., nope:]

    q_pe = _deepseek_transpose(q_pe)
    k_pe = jnp.broadcast_to(_deepseek_transpose(k_pe), (B, H, S, rope))

    query = jnp.concatenate([q_nope, q_pe], -1)
    key = jnp.concatenate([k_nope, k_pe], -1)
    val = jnp.concatenate(
        [v_st, jnp.zeros((B, H, S, q_head_dim - vdim), x.dtype)], -1)
    return jnp.concatenate([query, key, val], axis=1)


# ----------------------------------- main ------------------------------------
if __name__ == "__main__":
    cfg = SmallMlaConfig()
    B, S = 2, 8
    H = cfg.num_attention_heads
    q_head_dim = cfg.qk_nope_head_dim + cfg.qk_rope_head_dim

    key = jax.random.PRNGKey(0)
    ks = jax.random.split(key, 7)
    scale = 0.02

    # PyTorch Linear weights are (out, in); stored pre-transposed as (in, out).
    # (Production would use bf16 for activations/weights; f32 here for the test.)
    params = {
        "wqa_t": scale * jax.random.normal(
            ks[0], (cfg.hidden_size, cfg.q_lora_rank), jnp.float32),
        "qa_ln": 1.0 + 0.1 * jax.random.normal(
            ks[1], (1, cfg.q_lora_rank), jnp.float32),
        "wqb_t": scale * jax.random.normal(
            ks[2], (cfg.q_lora_rank, H * q_head_dim), jnp.float32),
        "wkva_t": scale * jax.random.normal(
            ks[3], (cfg.hidden_size, cfg.kv_lora_rank + cfg.qk_rope_head_dim),
            jnp.float32),
        "kva_ln": 1.0 + 0.1 * jax.random.normal(
            ks[4], (1, cfg.kv_lora_rank), jnp.float32),
        "wkvb_t": scale * jax.random.normal(
            ks[5], (cfg.kv_lora_rank, H * (cfg.qk_nope_head_dim + cfg.v_head_dim)),
            jnp.float32),
    }

    x = jax.random.normal(ks[6], (B, S, cfg.hidden_size), jnp.float32)

    out = jax.block_until_ready(mla_qkv_gemm(x, params, cfg))
    ref = jax.block_until_ready(_reference(x, params, cfg))

    assert out.shape == (B, 3 * H, S, q_head_dim), out.shape
    # Tolerance accounts for TPU default f32 matmul precision (bf16 MXU passes)
    # possibly differing between the Pallas dots and the XLA reference dots.
    np.testing.assert_allclose(np.asarray(out), np.asarray(ref),
                               rtol=2e-3, atol=2e-3)

    print("KERNEL_OK")
</pallas_src>

<mosaic_0001>
module attributes {stable_mosaic.version = 11 : i64} {
  func.func @_a_proj_norm_kernel(%arg0: i32, %arg1: memref<8x256xf32, #tpu.memory_space<vmem>>, %arg2: memref<256x384xf32, #tpu.memory_space<vmem>>, %arg3: memref<1x128xf32, #tpu.memory_space<vmem>>, %arg4: memref<1x128xf32, #tpu.memory_space<vmem>>, %arg5: memref<8x128xf32, #tpu.memory_space<vmem>>, %arg6: memref<8x128xf32, #tpu.memory_space<vmem>>, %arg7: memref<8x128xf32, #tpu.memory_space<vmem>>) attributes {dimension_semantics = [#tpu.dimension_semantics<parallel>], iteration_bounds = array<i64: 2>, scalar_prefetch = 0 : i64, scratch_operands = 0 : i64, tpu.core_type = #tpu.core_type<tc>, window_params = [{transform_indices = @transform_0, window_bounds = array<i64: 8, 256>}, {pipeline_mode = #tpu.pipeline_mode<synchronous>, transform_indices = @transform_1, window_bounds = array<i64: 256, 384>}, {pipeline_mode = #tpu.pipeline_mode<synchronous>, transform_indices = @transform_2, window_bounds = array<i64: 1, 128>}, {pipeline_mode = #tpu.pipeline_mode<synchronous>, transform_indices = @transform_3, window_bounds = array<i64: 1, 128>}, {transform_indices = @transform_4, window_bounds = array<i64: 8, 128>}, {transform_indices = @transform_5, window_bounds = array<i64: 8, 128>}, {transform_indices = @transform_6, window_bounds = array<i64: 8, 128>}]} {
    %c0 = arith.constant 0 : index
    %c0_0 = arith.constant 0 : index
    %0 = vector.load %arg1[%c0, %c0_0] : memref<8x256xf32, #tpu.memory_space<vmem>>, vector<8x256xf32>
    %c0_1 = arith.constant 0 : index
    %c0_2 = arith.constant 0 : index
    %1 = vector.load %arg2[%c0_1, %c0_2] : memref<256x384xf32, #tpu.memory_space<vmem>>, vector<256x384xf32>
    %cst = arith.constant dense<0.000000e+00> : vector<8x384xf32>
    %2 = tpu.matmul %0, %1, %cst {dimension_numbers = #tpu.dot_dimension_numbers<[1], [0], [0], [1], [0, 0, 1, 1], [], []>} : vector<8x256xf32>, vector<256x384xf32>, vector<8x384xf32> -> vector<8x384xf32>
    %3 = vector.extract_strided_slice %2 {offsets = [0, 0], sizes = [8, 128], strides = [1, 1]} : vector<8x384xf32> to vector<8x128xf32>
    %4 = vector.extract_strided_slice %2 {offsets = [0, 128], sizes = [8, 128], strides = [1, 1]} : vector<8x384xf32> to vector<8x128xf32>
    %5 = vector.extract_strided_slice %2 {offsets = [0, 256], sizes = [8, 128], strides = [1, 1]} : vector<8x384xf32> to vector<8x128xf32>
    %6 = arith.mulf %3, %3 : vector<8x128xf32>
    %cst_3 = arith.constant dense<0.000000e+00> : vector<8xf32>
    %7 = vector.multi_reduction <add>, %6, %cst_3 [1] : vector<8x128xf32> to vector<8xf32>
    %8 = vector.shape_cast %7 : vector<8xf32> to vector<8x1xf32>
    %cst_4 = arith.constant 1.280000e+02 : f32
    %9 = vector.broadcast %cst_4 : f32 to vector<8x1xf32>
    %10 = arith.divf %8, %9 : vector<8x1xf32>
    %cst_5 = arith.constant 9.99999997E-7 : f32
    %11 = vector.broadcast %cst_5 : f32 to vector<8x1xf32>
    %12 = arith.addf %10, %11 : vector<8x1xf32>
    %13 = math.rsqrt %12 : vector<8x1xf32>
    %14 = vector.broadcast %13 : vector<8x1xf32> to vector<8x128xf32>
    %15 = arith.mulf %3, %14 : vector<8x128xf32>
    %c0_6 = arith.constant 0 : index
    %c0_7 = arith.constant 0 : index
    %16 = vector.load %arg3[%c0_6, %c0_7] : memref<1x128xf32, #tpu.memory_space<vmem>>, vector<1x128xf32>
    %17 = vector.shape_cast %16 : vector<1x128xf32> to vector<128xf32>
    %18 = vector.shape_cast %17 : vector<128xf32> to vector<1x128xf32>
    %19 = vector.broadcast %18 : vector<1x128xf32> to vector<8x128xf32>
    %20 = arith.mulf %15, %19 : vector<8x128xf32>
    %21 = arith.mulf %4, %4 : vector<8x128xf32>
    %cst_8 = arith.constant dense<0.000000e+00> : vector<8xf32>
    %22 = vector.multi_reduction <add>, %21, %cst_8 [1] : vector<8x128xf32> to vector<8xf32>
    %23 = vector.shape_cast %22 : vector<8xf32> to vector<8x1xf32>
    %cst_9 = arith.constant 1.280000e+02 : f32
    %24 = vector.broadcast %cst_9 : f32 to vector<8x1xf32>
    %25 = arith.divf %23, %24 : vector<8x1xf32>
    %cst_10 = arith.constant 9.99999997E-7 : f32
    %26 = vector.broadcast %cst_10 : f32 to vector<8x1xf32>
    %27 = arith.addf %25, %26 : vector<8x1xf32>
    %28 = math.rsqrt %27 : vector<8x1xf32>
    %29 = vector.broadcast %28 : vector<8x1xf32> to vector<8x128xf32>
    %30 = arith.mulf %4, %29 : vector<8x128xf32>
    %c0_11 = arith.constant 0 : index
    %c0_12 = arith.constant 0 : index
    %31 = vector.load %arg4[%c0_11, %c0_12] : memref<1x128xf32, #tpu.memory_space<vmem>>, vector<1x128xf32>
    %32 = vector.shape_cast %31 : vector<1x128xf32> to vector<128xf32>
    %33 = vector.shape_cast %32 : vector<128xf32> to vector<1x128xf32>
    %34 = vector.broadcast %33 : vector<1x128xf32> to vector<8x128xf32>
    %35 = arith.mulf %30, %34 : vector<8x128xf32>
    %c0_13 = arith.constant 0 : index
    %c0_14 = arith.constant 0 : index
    %36 = vector.load %arg5[%c0_13, %c0_14] : memref<8x128xf32, #tpu.memory_space<vmem>>, vector<8x128xf32>
    tpu.vector_store %arg5[%c0_13, %c0_14], %20 {strides = array<i32>} : memref<8x128xf32, #tpu.memory_space<vmem>>, vector<8x128xf32>,
    %c0_15 = arith.constant 0 : index
    %c0_16 = arith.constant 0 : index
    %37 = vector.load %arg6[%c0_15, %c0_16] : memref<8x128xf32, #tpu.memory_space<vmem>>, vector<8x128xf32>
    tpu.vector_store %arg6[%c0_15, %c0_16], %35 {strides = array<i32>} : memref<8x128xf32, #tpu.memory_space<vmem>>, vector<8x128xf32>,
    %c0_17 = arith.constant 0 : index
    %c0_18 = arith.constant 0 : index
    %38 = vector.load %arg7[%c0_17, %c0_18] : memref<8x128xf32, #tpu.memory_space<vmem>>, vector<8x128xf32>
    tpu.vector_store %arg7[%c0_17, %c0_18], %5 {strides = array<i32>} : memref<8x128xf32, #tpu.memory_space<vmem>>, vector<8x128xf32>,
    return
  }
  func.func @transform_0(%arg0: i32) -> (i32, i32) {
    %c0_i32 = arith.constant 0 : i32
    %c0_i32_0 = arith.constant 0 : i32
    return %arg0, %c0_i32 : i32, i32
  }
  func.func @transform_1(%arg0: i32) -> (i32, i32) {
    %c0_i32 = arith.constant 0 : i32
    %c0_i32_0 = arith.constant 0 : i32
    %c0_i32_1 = arith.constant 0 : i32
    return %c0_i32, %c0_i32_0 : i32, i32
  }
  func.func @transform_2(%arg0: i32) -> (i32, i32) {
    %c0_i32 = arith.constant 0 : i32
    %c0_i32_0 = arith.constant 0 : i32
    %c0_i32_1 = arith.constant 0 : i32
    return %c0_i32, %c0_i32_0 : i32, i32
  }
  func.func @transform_3(%arg0: i32) -> (i32, i32) {
    %c0_i32 = arith.constant 0 : i32
    %c0_i32_0 = arith.constant 0 : i32
    %c0_i32_1 = arith.constant 0 : i32
    return %c0_i32, %c0_i32_0 : i32, i32
  }
  func.func @transform_4(%arg0: i32) -> (i32, i32) {
    %c0_i32 = arith.constant 0 : i32
    %c0_i32_0 = arith.constant 0 : i32
    return %arg0, %c0_i32 : i32, i32
  }
  func.func @transform_5(%arg0: i32) -> (i32, i32) {
    %c0_i32 = arith.constant 0 : i32
    %c0_i32_0 = arith.constant 0 : i32
    return %arg0, %c0_i32 : i32, i32
  }
  func.func @transform_6(%arg0: i32) -> (i32, i32) {
    %c0_i32 = arith.constant 0 : i32
    %c0_i32_0 = arith.constant 0 : i32
    return %arg0, %c0_i32 : i32, i32
  }
}

</mosaic_0001>

<llo_original>
// kernel: tpu_custom_call.1
$region0: #{tpu_custom_call.1}
  #allocation0 [shape = 'u32[]', space=smem, size = 0x4, offset = 0x4, fixed_abs, tag = 'smem constant byte address 0x4 - core index']
  #allocation1 [shape = 'u32[144,128]{1,0:T(1,128)}', space=vmem, size = 0x12000, scoped, tag = 'internal scratch']
  %s0 = inlined_call_operand.hbm [shape: f32[16,256], index: 0, kind: input, shape index: {}]
  %s1 = inlined_call_operand.hbm [shape: f32[256,384], index: 1, kind: input, shape index: {}]
  %s2 = inlined_call_operand.vmem [shape: f32[1,128], index: 2, kind: input, shape index: {}]
  %s3 = inlined_call_operand.vmem [shape: f32[1,128], index: 3, kind: input, shape index: {}]
  %s4 = inlined_call_operand.hbm [shape: f32[16,128], index: 4, kind: output, shape index: {0}]
  %s5 = inlined_call_operand.hbm [shape: f32[16,128], index: 5, kind: output, shape index: {1}]
  %s6 = inlined_call_operand.hbm [shape: f32[16,128], index: 6, kind: output, shape index: {2}]
  %7 = xla_tuple %s4, %s5, %s6
  %s8 = sld [smem:[#allocation0]]
  $region73: #{tpu_custom_call.1} parent=0
    _
  %s10 = ssub.s32 1, %s8
  %s11 = scalar_select 0, %s10, %s8
  $region1: #{tpu_custom_call.1} parent=0
    #allocation2 [shape = 'u8[16384]{0}', space=vmem, size = 0x4000, scoped, tag = 'input window, operand 0']
    #allocation3 [shape = 's32[2]{0}', space=sflag, size = 0x8, scoped, tag = 'scoped memory for tpu_custom_call.1']
    #allocation4 [shape = 's32[2]{0}', space=sflag, size = 0x8, scoped, tag = 'scoped memory for tpu_custom_call.1']
    #allocation5 [shape = 'u8[393216]{0}', space=vmem, size = 0x60000, scoped, tag = 'input window, operand 1, single buffered']
    #allocation6 [shape = 's32[1]{0}', space=sflag, size = 0x4, scoped, tag = 'scoped memory for tpu_custom_call.1']
    #allocation7 [shape = 'u8[8192]{0}', space=vmem, size = 0x2000, scoped, tag = 'output window, operand 0']
    #allocation8 [shape = 'u8[8192]{0}', space=vmem, size = 0x2000, scoped, tag = 'output window, operand 1']
    #allocation9 [shape = 's32[2]{0}', space=sflag, size = 0x8, scoped, tag = 'scoped memory for tpu_custom_call.1']
    #allocation10 [shape = 'u8[8192]{0}', space=vmem, size = 0x2000, scoped, tag = 'output window, operand 2']
    %12 = vsyncpa [#allocation3], 0
    %s13 = scalar_lea.sflag [#allocation3], 1
    %14 = vsyncpa %s13, 0
    %15 = vsyncpa [#allocation6], 0
    %16 = vsyncpa [#allocation4], 0
    %s17 = scalar_lea.sflag [#allocation4], 1
    %18 = vsyncpa %s17, 0
    %19 = vsyncpa [#allocation9], 0
    %s20 = scalar_lea.sflag [#allocation9], 1
    %21 = vsyncpa %s20, 0
    loop: start=0, step=1, limit=4
    $region2: #{tpu_custom_call.1} parent=1 // loop_pre_header
      _
    $region3: #{tpu_custom_call.1} parent=1 // loop_header
      %s23 = sphi 0, %s27
      %p24 = scmp.ge.s32.totalorder %s23, 4
      %s33 = sphi 0, %s35
      %s36 = sphi 0, %s33
      %s37 = sphi 0, %s36
      %s53 = sphi 0, %s37
      %s57 = sphi 0, %s57
      %s59 = sphi 0, %s57
      %s60 = sphi 0, %s59
      %s74 = sphi 0, %s60
      %s78 = sphi 0, %s78
      %s80 = sphi 0, %s78
      %s81 = sphi 0, %s80
      %s95 = sphi 0, %s81
      %s99 = sphi 0, %s99
      %s101 = sphi 0, %s99
      %s102 = sphi 0, %s101
      %s116 = sphi 0, %s102
      %s122 = sphi 0, %s124
      %s125 = sphi 0, %s122
      %s126 = sphi 0, %s125
      %s142 = sphi 0, %s126
      %s148 = sphi 0, %s150
      %s151 = sphi 0, %s148
      %s152 = sphi 0, %s151
      %s168 = sphi 0, %s152
      %s174 = sphi 0, %s176
      %s177 = sphi 0, %s174
      %s178 = sphi 0, %s177
      %s194 = sphi 0, %s178
    $region4: #{tpu_custom_call.1} parent=1 // loop_header_branch
      %26 = sbr.rel (%p24) target = $region8
    $region5: #{tpu_custom_call.1} parent=1 // loop_body
      %s28 = ssub.s32 %s23, 1
      %s29 = ssub.s32 %s23, 2
      %s30 = sadd.s32 %s23, 1
      %s31 = ssub.s32 %s23, %s30
      %p32 = scmp.eq.s32.totalorder %s31, 0
      %s34 = sadd.s32 %s33, 1
      %s35 = scalar_select %p32, %s33, %s34
      %p38 = pneg %p32
      %p39 = scmp.eq.s32.totalorder %s23, 1
      %p40 = por %p38, %p39
      %p41 = scmp.ne.s32.totalorder %s33, %s36
      %p42 = scmp.eq.s32.totalorder %s23, 0
      %p43 = por %p41, %p42
      %p44 = scmp.ne.s32.totalorder %s33, %s36
      %p45 = scmp.eq.s32.totalorder %s28, 1
      %p46 = por %p44, %p45
      %p47 = scmp.ne.s32.totalorder %s36, %s37
      %p48 = scmp.eq.s32.totalorder %s28, 0
      %p49 = por %p47, %p48
      %p50 = scmp.ne.s32.totalorder %s36, %s37
      %p51 = scmp.eq.s32.totalorder %s29, 1
      %p52 = por %p50, %p51
      %p54 = scmp.ne.s32.totalorder %s37, %s53
      %p55 = scmp.eq.s32.totalorder %s29, 0
      %p56 = por %p54, %p55
      %s58 = sadd.s32 %s57, 1
      %p61 = scmp.eq.s32.totalorder %s23, 1
      %p62 = scmp.ne.s32.totalorder %s57, %s59
      %p63 = scmp.eq.s32.totalorder %s23, 0
      %p64 = por %p62, %p63
      %p65 = scmp.ne.s32.totalorder %s57, %s59
      %p66 = scmp.eq.s32.totalorder %s28, 1
      %p67 = por %p65, %p66
      %p68 = scmp.ne.s32.totalorder %s59, %s60
      %p69 = scmp.eq.s32.totalorder %s28, 0
      %p70 = por %p68, %p69
      %p71 = scmp.ne.s32.totalorder %s59, %s60
      %p72 = scmp.eq.s32.totalorder %s29, 1
      %p73 = por %p71, %p72
      %p75 = scmp.ne.s32.totalorder %s60, %s74
      %p76 = scmp.eq.s32.totalorder %s29, 0
      %p77 = por %p75, %p76
      %s79 = sadd.s32 %s78, 1
      %p82 = scmp.eq.s32.totalorder %s23, 1
      %p83 = scmp.ne.s32.totalorder %s78, %s80
      %p84 = scmp.eq.s32.totalorder %s23, 0
      %p85 = por %p83, %p84
      %p86 = scmp.ne.s32.totalorder %s78, %s80
      %p87 = scmp.eq.s32.totalorder %s28, 1
      %p88 = por %p86, %p87
      %p89 = scmp.ne.s32.totalorder %s80, %s81
      %p90 = scmp.eq.s32.totalorder %s28, 0
      %p91 = por %p89, %p90
      %p92 = scmp.ne.s32.totalorder %s80, %s81
      %p93 = scmp.eq.s32.totalorder %s29, 1
      %p94 = por %p92, %p93
      %p96 = scmp.ne.s32.totalorder %s81, %s95
      %p97 = scmp.eq.s32.totalorder %s29, 0
      %p98 = por %p96, %p97
      %s100 = sadd.s32 %s99, 1
      %p103 = scmp.eq.s32.totalorder %s23, 1
      %p104 = scmp.ne.s32.totalorder %s99, %s101
      %p105 = scmp.eq.s32.totalorder %s23, 0
      %p106 = por %p104, %p105
      %p107 = scmp.ne.s32.totalorder %s99, %s101
      %p108 = scmp.eq.s32.totalorder %s28, 1
      %p109 = por %p107, %p108
      %p110 = scmp.ne.s32.totalorder %s101, %s102
      %p111 = scmp.eq.s32.totalorder %s28, 0
      %p112 = por %p110, %p111
      %p113 = scmp.ne.s32.totalorder %s101, %s102
      %p114 = scmp.eq.s32.totalorder %s29, 1
      %p115 = por %p113, %p114
      %p117 = scmp.ne.s32.totalorder %s102, %s116
      %p118 = scmp.eq.s32.totalorder %s29, 0
      %p119 = por %p117, %p118
      %s120 = ssub.s32 %s23, %s30
      %p121 = scmp.eq.s32.totalorder %s120, 0
      %s123 = sadd.s32 %s122, 1
      %s124 = scalar_select %p121, %s122, %s123
      %p127 = pneg %p121
      %p128 = scmp.eq.s32.totalorder %s23, 1
      %p129 = por %p127, %p128
      %p130 = scmp.ne.s32.totalorder %s122, %s125
      %p131 = scmp.eq.s32.totalorder %s23, 0
      %p132 = por %p130, %p131
      %p133 = scmp.ne.s32.totalorder %s122, %s125
      %p134 = scmp.eq.s32.totalorder %s28, 1
      %p135 = por %p133, %p134
      %p136 = scmp.ne.s32.totalorder %s125, %s126
      %p137 = scmp.eq.s32.totalorder %s28, 0
      %p138 = por %p136, %p137
      %p139 = scmp.ne.s32.totalorder %s125, %s126
      %p140 = scmp.eq.s32.totalorder %s29, 1
      %p141 = por %p139, %p140
      %p143 = scmp.ne.s32.totalorder %s126, %s142
      %p144 = scmp.eq.s32.totalorder %s29, 0
      %p145 = por %p143, %p144
      %s146 = ssub.s32 %s23, %s30
      %p147 = scmp.eq.s32.totalorder %s146, 0
      %s149 = sadd.s32 %s148, 1
      %s150 = scalar_select %p147, %s148, %s149
      %p153 = pneg %p147
      %p154 = scmp.eq.s32.totalorder %s23, 1
      %p155 = por %p153, %p154
      %p156 = scmp.ne.s32.totalorder %s148, %s151
      %p157 = scmp.eq.s32.totalorder %s23, 0
      %p158 = por %p156, %p157
      %p159 = scmp.ne.s32.totalorder %s148, %s151
      %p160 = scmp.eq.s32.totalorder %s28, 1
      %p161 = por %p159, %p160
      %p162 = scmp.ne.s32.totalorder %s151, %s152
      %p163 = scmp.eq.s32.totalorder %s28, 0
      %p164 = por %p162, %p163
      %p165 = scmp.ne.s32.totalorder %s151, %s152
      %p166 = scmp.eq.s32.totalorder %s29, 1
      %p167 = por %p165, %p166
      %p169 = scmp.ne.s32.totalorder %s152, %s168
      %p170 = scmp.eq.s32.totalorder %s29, 0
      %p171 = por %p169, %p170
      %s172 = ssub.s32 %s23, %s30
      %p173 = scmp.eq.s32.totalorder %s172, 0
      %s175 = sadd.s32 %s174, 1
      %s176 = scalar_select %p173, %s174, %s175
      %p179 = pneg %p173
      %p180 = scmp.eq.s32.totalorder %s23, 1
      %p181 = por %p179, %p180
      %p182 = scmp.ne.s32.totalorder %s174, %s177
      %p183 = scmp.eq.s32.totalorder %s23, 0
      %p184 = por %p182, %p183
      %p185 = scmp.ne.s32.totalorder %s174, %s177
      %p186 = scmp.eq.s32.totalorder %s28, 1
      %p187 = por %p185, %p186
      %p188 = scmp.ne.s32.totalorder %s177, %s178
      %p189 = scmp.eq.s32.totalorder %s28, 0
      %p190 = por %p188, %p189
      %p191 = scmp.ne.s32.totalorder %s177, %s178
      %p192 = scmp.eq.s32.totalorder %s29, 1
      %p193 = por %p191, %p192
      %p195 = scmp.ne.s32.totalorder %s178, %s194
      %p196 = scmp.eq.s32.totalorder %s29, 0
      %p197 = por %p195, %p196
      %p198 = scmp.le.s32.totalorder 1, %s23
      %p199 = scmp.lt.s32.totalorder %s23, 3
      %p200 = pnand %p198, %p199
      %p201 = pneg %p200
      // Predicated region
      $region9: #{tpu_custom_call.1} parent=5 // pred_check
        _
      $region10: #{tpu_custom_call.1} parent=5 // pred_check_branch
        %203 = sbr.rel (%p200) target = $region12
      $region11: #{tpu_custom_call.1} parent=5 // pred_region
        %s204 = ssub.s32 %s23, 1
        // Predicated region
        $region13: #{tpu_custom_call.1} parent=11 // pred_check
          %p205 = pneg %p70
        $region14: #{tpu_custom_call.1} parent=11 // pred_check_branch
          %207 = sbr.rel (%p205) target = $region16
        $region15: #{tpu_custom_call.1} parent=11 // pred_region
          %s209 = ssub.s32 12288, 12288
          %210 = vsyncadd [#allocation6], %s209
          %s211 = sshll.u32 [#allocation5], 4
          %s212 = int_to_ptr.vmem [resolvable:$true] %s211
          %217 = dma.hbm_to_vmem [thread:$0]  %s1, 12288, %s212, [#allocation6], 384, 384, 24
        $region16: #{tpu_custom_call.1} parent=11 // pred_fallthru
          _
        // Predicated region
        $region17: #{tpu_custom_call.1} parent=11 // pred_check
          %p218 = pneg %p91
        $region18: #{tpu_custom_call.1} parent=11 // pred_check_branch
          %220 = sbr.rel (%p218) target = $region20
        $region19: #{tpu_custom_call.1} parent=11 // pred_region
          _
        $region20: #{tpu_custom_call.1} parent=11 // pred_fallthru
          _
        // Predicated region
        $region21: #{tpu_custom_call.1} parent=11 // pred_check
          %p221 = pneg %p112
        $region22: #{tpu_custom_call.1} parent=11 // pred_check_branch
          %223 = sbr.rel (%p221) target = $region24
        $region23: #{tpu_custom_call.1} parent=11 // pred_region
          _
        $region24: #{tpu_custom_call.1} parent=11 // pred_fallthru
          _
      $region12: #{tpu_custom_call.1} parent=5 // pred_fallthru
        _
      %p224 = scmp.lt.s32.totalorder %s23, 2
      // Predicated region
      $region25: #{tpu_custom_call.1} parent=5 // pred_check
        %p225 = pneg %p224
      $region26: #{tpu_custom_call.1} parent=5 // pred_check_branch
        %227 = sbr.rel (%p225) target = $region28
      $region27: #{tpu_custom_call.1} parent=5 // pred_region
        // Predicated region
        $region29: #{tpu_custom_call.1} parent=27 // pred_check
          %p228 = pneg %p43
        $region30: #{tpu_custom_call.1} parent=27 // pred_check_branch
          %230 = sbr.rel (%p228) target = $region32
        $region31: #{tpu_custom_call.1} parent=27 // pred_region
          %s231 = sand.u32 %s33, 1
          %s232 = scalar_lea.sflag [#allocation3], %s231
          %s233 = sand.u32 %s33, 1
          %s234 = smul.addr %s233, 16
          %s235 = scalar_lea.vmem [#allocation2], %s234
          %s237 = ssub.s32 256, 256
          %238 = vsyncadd %s232, %s237
          %s239 = smul.addr %s23, 2
          %s240 = smul.addr %s239, 128
          %s241 = scalar_lea.hbm %s0, %s240
          %s243 = sshll.u32 %s235, 4
          %s244 = int_to_ptr.vmem [resolvable:$true] %s243
          %246 = dma.hbm_to_vmem [thread:$0]  %s241, 256, %s244, %s232
        $region32: #{tpu_custom_call.1} parent=27 // pred_fallthru
          _
      $region28: #{tpu_custom_call.1} parent=5 // pred_fallthru
        _
      %p247 = scmp.le.s32.totalorder 1, %s23
      %p248 = scmp.lt.s32.totalorder %s23, 3
      %p249 = pnand %p247, %p248
      %p250 = pneg %p249
      // Predicated region
      $region33: #{tpu_custom_call.1} parent=5 // pred_check
        _
      $region34: #{tpu_custom_call.1} parent=5 // pred_check_branch
        %252 = sbr.rel (%p249) target = $region36
      $region35: #{tpu_custom_call.1} parent=5 // pred_region
        %s253 = ssub.s32 %s23, 1
        %s254 = sand.u32 %s36, 1
        %s255 = scalar_lea.sflag [#allocation3], %s254
        %s256 = sand.u32 %s36, 1
        %s257 = smul.addr %s256, 16
        %s258 = scalar_lea.vmem [#allocation2], %s257
        // Predicated region
        $region37: #{tpu_custom_call.1} parent=35 // pred_check
          %p259 = pneg %p49
        $region38: #{tpu_custom_call.1} parent=35 // pred_check_branch
          %261 = sbr.rel (%p259) target = $region40
        $region39: #{tpu_custom_call.1} parent=35 // pred_region
          %262 = dma.done %s255, 256
        $region40: #{tpu_custom_call.1} parent=35 // pred_fallthru
          _
        // Predicated region
        $region41: #{tpu_custom_call.1} parent=35 // pred_check
          %p263 = pneg %p70
        $region42: #{tpu_custom_call.1} parent=35 // pred_check_branch
          %265 = sbr.rel (%p263) target = $region44
        $region43: #{tpu_custom_call.1} parent=35 // pred_region
          %266 = dma.done [#allocation6], 12288
        $region44: #{tpu_custom_call.1} parent=35 // pred_fallthru
          _
        %s267 = sand.u32 %s36, 1
        %s268 = scalar_lea.sflag [#allocation3], %s267
        %s269 = sand.u32 %s36, 1
        %s270 = smul.addr %s269, 16
        %s271 = scalar_lea.vmem [#allocation2], %s270
        %p272 = pneg %p49
        %p273 = pneg %p46
        %p274 = pneg %p70
        %p275 = pneg %p67
        %p276 = pneg %p91
        %p277 = pneg %p88
        %p278 = pneg %p112
        %p279 = pneg %p109
        %p280 = pneg %p138
        %p281 = pneg %p135
        %s282 = sand.u32 %s125, 1
        %s283 = scalar_lea.sflag [#allocation4], %s282
        %s284 = sand.u32 %s125, 1
        %s285 = smul.addr %s284, 8
        %s286 = scalar_lea.vmem [#allocation7], %s285
        %p287 = pneg %p164
        %p288 = pneg %p161
        %s289 = sand.u32 %s28, 1
        %s290 = scalar_lea.sflag [#allocation9], %s289
        %s291 = sand.u32 %s151, 1
        %s292 = smul.addr %s291, 8
        %s293 = scalar_lea.vmem [#allocation8], %s292
        %p294 = pneg %p190
        %p295 = pneg %p187
        %s296 = sand.u32 %s28, 1
        %s297 = scalar_lea.sflag [#allocation9], %s296
        %s298 = sand.u32 %s177, 1
        %s299 = smul.addr %s298, 8
        %s300 = scalar_lea.vmem [#allocation10], %s299
        %v301 = vld [vmem:[%s258] sm:$0xff]
        %v302 = vld [vmem:[%s258 + $0x8] sm:$0xff]
        %v303 = vld [vmem:[#allocation5] sm:$0xff]
        %v304 = vld [vmem:[#allocation5 + $0x8] sm:$0xff]
        %v305 = vld [vmem:[#allocation5 + $0x10] sm:$0xff]
        %v306 = vld [vmem:[#allocation5 + $0x18] sm:$0xff]
        %v307 = vld [vmem:[#allocation5 + $0x20] sm:$0xff]
        %v308 = vld [vmem:[#allocation5 + $0x28] sm:$0xff]
        %v309 = vld [vmem:[#allocation5 + $0x30] sm:$0xff]
        %v310 = vld [vmem:[#allocation5 + $0x38] sm:$0xff]
        %v311 = vld [vmem:[#allocation5 + $0x40] sm:$0xff]
        %v312 = vld [vmem:[#allocation5 + $0x48] sm:$0xff]
        %v313 = vld [vmem:[#allocation5 + $0x50] sm:$0xff]
        %v314 = vld [vmem:[#allocation5 + $0x58] sm:$0xff]
        %v315 = vld [vmem:[#allocation5 + $0x60] sm:$0xff]
        %v316 = vld [vmem:[#allocation5 + $0x68] sm:$0xff]
        %v317 = vld [vmem:[#allocation5 + $0x70] sm:$0xff]
        %v318 = vld [vmem:[#allocation5 + $0x78] sm:$0xff]
        %v319 = vld [vmem:[#allocation5 + $0x80] sm:$0xff]
        %v320 = vld [vmem:[#allocation5 + $0x88] sm:$0xff]
        %v321 = vld [vmem:[#allocation5 + $0x90] sm:$0xff]
        %v322 = vld [vmem:[#allocation5 + $0x98] sm:$0xff]
        %v323 = vld [vmem:[#allocation5 + $0xa0] sm:$0xff]
        %v324 = vld [vmem:[#allocation5 + $0xa8] sm:$0xff]
        %v325 = vld [vmem:[#allocation5 + $0xb0] sm:$0xff]
        %v326 = vld [vmem:[#allocation5 + $0xb8] sm:$0xff]
        %v327 = vld [vmem:[#allocation5 + $0xc0] sm:$0xff]
        %v328 = vld [vmem:[#allocation5 + $0xc8] sm:$0xff]
        %v329 = vld [vmem:[#allocation5 + $0xd0] sm:$0xff]
        %v330 = vld [vmem:[#allocation5 + $0xd8] sm:$0xff]
        %v331 = vld [vmem:[#allocation5 + $0xe0] sm:$0xff]
        %v332 = vld [vmem:[#allocation5 + $0xe8] sm:$0xff]
        %v333 = vld [vmem:[#allocation5 + $0xf0] sm:$0xff]
        %v334 = vld [vmem:[#allocation5 + $0xf8] sm:$0xff]
        %v335 = vld [vmem:[#allocation5 + $0x100] sm:$0xff]
        %v336 = vld [vmem:[#allocation5 + $0x108] sm:$0xff]
        %v337 = vld [vmem:[#allocation5 + $0x110] sm:$0xff]
        %v338 = vld [vmem:[#allocation5 + $0x118] sm:$0xff]
        %v339 = vld [vmem:[#allocation5 + $0x120] sm:$0xff]
        %v340 = vld [vmem:[#allocation5 + $0x128] sm:$0xff]
        %v341 = vld [vmem:[#allocation5 + $0x130] sm:$0xff]
        %v342 = vld [vmem:[#allocation5 + $0x138] sm:$0xff]
        %v343 = vld [vmem:[#allocation5 + $0x140] sm:$0xff]
        %v344 = vld [vmem:[#allocation5 + $0x148] sm:$0xff]
        %v345 = vld [vmem:[#allocation5 + $0x150] sm:$0xff]
        %v346 = vld [vmem:[#allocation5 + $0x158] sm:$0xff]
        %v347 = vld [vmem:[#allocation5 + $0x160] sm:$0xff]
        %v348 = vld [vmem:[#allocation5 + $0x168] sm:$0xff]
        %v349 = vld [vmem:[#allocation5 + $0x170] sm:$0xff]
        %v350 = vld [vmem:[#allocation5 + $0x178] sm:$0xff]
        %v351 = vld [vmem:[#allocation5 + $0x180] sm:$0xff]
        %v352 = vld [vmem:[#allocation5 + $0x188] sm:$0xff]
        %v353 = vld [vmem:[#allocation5 + $0x190] sm:$0xff]
        %v354 = vld [vmem:[#allocation5 + $0x198] sm:$0xff]
        %v355 = vld [vmem:[#allocation5 + $0x1a0] sm:$0xff]
        %v356 = vld [vmem:[#allocation5 + $0x1a8] sm:$0xff]
        %v357 = vld [vmem:[#allocation5 + $0x1b0] sm:$0xff]
        %v358 = vld [vmem:[#allocation5 + $0x1b8] sm:$0xff]
        %v359 = vld [vmem:[#allocation5 + $0x1c0] sm:$0xff]
        %v360 = vld [vmem:[#allocation5 + $0x1c8] sm:$0xff]
        %v361 = vld [vmem:[#allocation5 + $0x1d0] sm:$0xff]
        %v362 = vld [vmem:[#allocation5 + $0x1d8] sm:$0xff]
        %v363 = vld [vmem:[#allocation5 + $0x1e0] sm:$0xff]
        %v364 = vld [vmem:[#allocation5 + $0x1e8] sm:$0xff]
        %v365 = vld [vmem:[#allocation5 + $0x1f0] sm:$0xff]
        %v366 = vld [vmem:[#allocation5 + $0x1f8] sm:$0xff]
        %v367 = vld [vmem:[#allocation5 + $0x200] sm:$0xff]
        %v368 = vld [vmem:[#allocation5 + $0x208] sm:$0xff]
        %v369 = vld [vmem:[#allocation5 + $0x210] sm:$0xff]
        %v370 = vld [vmem:[#allocation5 + $0x218] sm:$0xff]
        %v371 = vld [vmem:[#allocation5 + $0x220] sm:$0xff]
        %v372 = vld [vmem:[#allocation5 + $0x228] sm:$0xff]
        %v373 = vld [vmem:[#allocation5 + $0x230] sm:$0xff]
        %v374 = vld [vmem:[#allocation5 + $0x238] sm:$0xff]
        %v375 = vld [vmem:[#allocation5 + $0x240] sm:$0xff]
        %v376 = vld [vmem:[#allocation5 + $0x248] sm:$0xff]
        %v377 = vld [vmem:[#allocation5 + $0x250] sm:$0xff]
        %v378 = vld [vmem:[#allocation5 + $0x258] sm:$0xff]
        %v379 = vld [vmem:[#allocation5 + $0x260] sm:$0xff]
        %v380 = vld [vmem:[#allocation5 + $0x268] sm:$0xff]
        %v381 = vld [vmem:[#allocation5 + $0x270] sm:$0xff]
        %v382 = vld [vmem:[#allocation5 + $0x278] sm:$0xff]
        %v383 = vld [vmem:[#allocation5 + $0x280] sm:$0xff]
        %v384 = vld [vmem:[#allocation5 + $0x288] sm:$0xff]
        %v385 = vld [vmem:[#allocation5 + $0x290] sm:$0xff]
        %v386 = vld [vmem:[#allocation5 + $0x298] sm:$0xff]
        %v387 = vld [vmem:[#allocation5 + $0x2a0] sm:$0xff]
        %v388 = vld [vmem:[#allocation5 + $0x2a8] sm:$0xff]
        %v389 = vld [vmem:[#allocation5 + $0x2b0] sm:$0xff]
        %v390 = vld [vmem:[#allocation5 + $0x2b8] sm:$0xff]
        %v391 = vld [vmem:[#allocation5 + $0x2c0] sm:$0xff]
        %v392 = vld [vmem:[#allocation5 + $0x2c8] sm:$0xff]
        %v393 = vld [vmem:[#allocation5 + $0x2d0] sm:$0xff]
        %v394 = vld [vmem:[#allocation5 + $0x2d8] sm:$0xff]
        %v395 = vld [vmem:[#allocation5 + $0x2e0] sm:$0xff]
        %v396 = vld [vmem:[#allocation5 + $0x2e8] sm:$0xff]
        %v397 = vld [vmem:[#allocation5 + $0x2f0] sm:$0xff]
        %v398 = vld [vmem:[#allocation5 + $0x2f8] sm:$0xff]
        %399 = vmatprep.subr.mxu0 %v304
        %400 = vmatpush1.msra.mxu0 %v303
        %401 = vmatprep.subr.mxu0 %v307
        %402 = vmatpush1.msra.mxu0 %v306
        %403 = vmatprep.subr.mxu0 %v310
        %404 = vmatpush1.msra.mxu0 %v309
        %405 = vmatprep.subr.mxu0 %v313
        %406 = vmatpush1.msra.mxu0 %v312
        %407 = vmatprep.subr.mxu0 %v316
        %408 = vmatpush1.msra.mxu0 %v315
        %409 = vmatprep.subr.mxu0 %v319
        %410 = vmatpush1.msra.mxu0 %v318
        %411 = vmatprep.subr.mxu0 %v322
        %412 = vmatpush1.msra.mxu0 %v321
        %413 = vmatprep.subr.mxu0 %v325
        %414 = vmatpush1.msra.mxu0 %v324
        %415 = vmatprep.subr.mxu0 %v328
        %416 = vmatpush1.msra.mxu0 %v327
        %417 = vmatprep.subr.mxu0 %v331
        %418 = vmatpush1.msra.mxu0 %v330
        %419 = vmatprep.subr.mxu0 %v334
        %420 = vmatpush1.msra.mxu0 %v333
        %421 = vmatprep.subr.mxu0 %v337
        %422 = vmatpush1.msra.mxu0 %v336
        %423 = vmatprep.subr.mxu0 %v340
        %424 = vmatpush1.msra.mxu0 %v339
        %425 = vmatprep.subr.mxu0 %v343
        %426 = vmatpush1.msra.mxu0 %v342
        %427 = vmatprep.subr.mxu0 %v346
        %428 = vmatpush1.msra.mxu0 %v345
        %429 = vmatprep.subr.mxu0 %v349
        %430 = vmatpush1.msra.mxu0 %v348
        %431 = vmatprep.subr.mxu0 %v352
        %432 = vmatpush1.msra.mxu0 %v351
        %433 = vmatprep.subr.mxu0 %v355
        %434 = vmatpush1.msra.mxu0 %v354
        %435 = vmatprep.subr.mxu0 %v358
        %436 = vmatpush1.msra.mxu0 %v357
        %437 = vmatprep.subr.mxu0 %v361
        %438 = vmatpush1.msra.mxu0 %v360
        %439 = vmatprep.subr.mxu0 %v364
        %440 = vmatpush1.msra.mxu0 %v363
        %441 = vmatprep.subr.mxu0 %v367
        %442 = vmatpush1.msra.mxu0 %v366
        %443 = vmatprep.subr.mxu0 %v370
        %444 = vmatpush1.msra.mxu0 %v369
        %445 = vmatprep.subr.mxu0 %v373
        %446 = vmatpush1.msra.mxu0 %v372
        %447 = vmatprep.subr.mxu0 %v376
        %448 = vmatpush1.msra.mxu0 %v375
        %449 = vmatprep.subr.mxu0 %v379
        %450 = vmatpush1.msra.mxu0 %v378
        %451 = vmatprep.subr.mxu0 %v382
        %452 = vmatpush1.msra.mxu0 %v381
        %453 = vmatprep.subr.mxu0 %v385
        %454 = vmatpush1.msra.mxu0 %v384
        %455 = vmatprep.subr.mxu0 %v388
        %456 = vmatpush1.msra.mxu0 %v387
        %457 = vmatprep.subr.mxu0 %v391
        %458 = vmatpush1.msra.mxu0 %v390
        %459 = vmatprep.subr.mxu0 %v394
        %460 = vmatpush1.msra.mxu0 %v393
        %461 = vmatprep.subr.mxu0 %v397
        %462 = vmatpush1.msra.mxu0 %v396
        %463 = vmatprep.mubr.f32.mxu0 %v302
        %464 = vmatmul.mubr.f32.gmra.mrb[0].mxu0 %v301
        %v465 = vpop.f32.mrb[0].mxu0
        %v466 = vadd.f32 0.0, %v465
        %v467 = vpop.f32.mrb[0].mxu0
        %v468 = vadd.f32 0.0, %v467
        %469 = vdwg.mxu0
        %470 = vmatprep.subr.mxu0 0.0
        %471 = vmatpush1.msra.mxu0 %v305
        %472 = vmatprep.subr.mxu0 0.0
        %473 = vmatpush1.msra.mxu0 %v308
        %474 = vmatprep.subr.mxu0 0.0
        %475 = vmatpush1.msra.mxu0 %v311
        %476 = vmatprep.subr.mxu0 0.0
        %477 = vmatpush1.msra.mxu0 %v314
        %478 = vmatprep.subr.mxu0 0.0
        %479 = vmatpush1.msra.mxu0 %v317
        %480 = vmatprep.subr.mxu0 0.0
        %481 = vmatpush1.msra.mxu0 %v320
        %482 = vmatprep.subr.mxu0 0.0
        %483 = vmatpush1.msra.mxu0 %v323
        %484 = vmatprep.subr.mxu0 0.0
        %485 = vmatpush1.msra.mxu0 %v326
        %486 = vmatprep.subr.mxu0 0.0
        %487 = vmatpush1.msra.mxu0 %v329
        %488 = vmatprep.subr.mxu0 0.0
        %489 = vmatpush1.msra.mxu0 %v332
        %490 = vmatprep.subr.mxu0 0.0
        %491 = vmatpush1.msra.mxu0 %v335
        %492 = vmatprep.subr.mxu0 0.0
        %493 = vmatpush1.msra.mxu0 %v338
        %494 = vmatprep.subr.mxu0 0.0
        %495 = vmatpush1.msra.mxu0 %v341
        %496 = vmatprep.subr.mxu0 0.0
        %497 = vmatpush1.msra.mxu0 %v344
        %498 = vmatprep.subr.mxu0 0.0
        %499 = vmatpush1.msra.mxu0 %v347
        %500 = vmatprep.subr.mxu0 0.0
        %501 = vmatpush1.msra.mxu0 %v350
        %502 = vmatprep.subr.mxu0 0.0
        %503 = vmatpush1.msra.mxu0 %v353
        %504 = vmatprep.subr.mxu0 0.0
        %505 = vmatpush1.msra.mxu0 %v356
        %506 = vmatprep.subr.mxu0 0.0
        %507 = vmatpush1.msra.mxu0 %v359
        %508 = vmatprep.subr.mxu0 0.0
        %509 = vmatpush1.msra.mxu0 %v362
        %510 = vmatprep.subr.mxu0 0.0
        %511 = vmatpush1.msra.mxu0 %v365
        %512 = vmatprep.subr.mxu0 0.0
        %513 = vmatpush1.msra.mxu0 %v368
        %514 = vmatprep.subr.mxu0 0.0
        %515 = vmatpush1.msra.mxu0 %v371
        %516 = vmatprep.subr.mxu0 0.0
        %517 = vmatpush1.msra.mxu0 %v374
        %518 = vmatprep.subr.mxu0 0.0
        %519 = vmatpush1.msra.mxu0 %v377
        %520 = vmatprep.subr.mxu0 0.0
        %521 = vmatpush1.msra.mxu0 %v380
        %522 = vmatprep.subr.mxu0 0.0
        %523 = vmatpush1.msra.mxu0 %v383
        %524 = vmatprep.subr.mxu0 0.0
        %525 = vmatpush1.msra.mxu0 %v386
        %526 = vmatprep.subr.mxu0 0.0
        %527 = vmatpush1.msra.mxu0 %v389
        %528 = vmatprep.subr.mxu0 0.0
        %529 = vmatpush1.msra.mxu0 %v392
        %530 = vmatprep.subr.mxu0 0.0
        %531 = vmatpush1.msra.mxu0 %v395
        %532 = vmatprep.subr.mxu0 0.0
        %533 = vmatpush1.msra.mxu0 %v398
        %534 = vmatprep.mubr.f32.mxu0 %v302
        %535 = vmatmul.mubr.f32.gmra.mrb[0].mxu0 %v301
        %v536 = vpop.f32.mrb[0].mxu0
        %v537 = vadd.f32 0.0, %v536
        %v538 = vpop.f32.mrb[0].mxu0
        %539 = vdwg.mxu0
        %v540 = vmul.f32 %v466, %v466
        %541 = vadd.xlane.f32.xlu0 %v540
        %v542 = vpop.xlane.xlu0 %541
        %v543 = vrcp.pop 128.0
        %v544 = vmul.f32 %v542, %v543
        %v545 = vadd.f32 %v544, 1e-06
        %v546 = vrsqrt.pop %v545
        %v547 = vmul.f32 %v466, %v546
        %v548 = vld [vmem:[%s2] sm:$0x1]
        %v550 = vlaneseq
        %v551 = vshrl.u32 %v550, 7
        %v552 = vsub.s32 0, %v551
        %v553 = vrot.slane %v548, %v552
        %v555 = vmul.f32 %v547, %v553
        %v556 = vmul.f32 %v468, %v468
        %557 = vadd.xlane.f32.xlu0 %v556
        %v558 = vpop.xlane.xlu0 %557
        %v559 = vmul.f32 %v558, %v543
        %v560 = vadd.f32 %v559, 1e-06
        %v561 = vrsqrt.pop %v560
        %v562 = vmul.f32 %v468, %v561
        %v563 = vld [vmem:[%s3] sm:$0x1]
        %v565 = vlaneseq
        %v566 = vshrl.u32 %v565, 7
        %v567 = vsub.s32 0, %v566
        %v568 = vrot.slane %v563, %v567
        %v570 = vmul.f32 %v562, %v568
        %571 = vst [vmem:[%s286] sm:$0xff] %v555
        %572 = vst [vmem:[%s293] sm:$0xff] %v570
        %573 = vst [vmem:[%s300] sm:$0xff] %v537
        %s574 = sand.u32 %s125, 1
        %s575 = scalar_lea.sflag [#allocation4], %s574
        %s576 = sand.u32 %s125, 1
        %s577 = smul.addr %s576, 8
        %s578 = scalar_lea.vmem [#allocation7], %s577
        %s579 = sand.u32 %s28, 1
        %s580 = scalar_lea.sflag [#allocation9], %s579
        %s581 = sand.u32 %s151, 1
        %s582 = smul.addr %s581, 8
        %s583 = scalar_lea.vmem [#allocation8], %s582
        %s584 = sand.u32 %s28, 1
        %s585 = scalar_lea.sflag [#allocation9], %s584
        %s586 = sand.u32 %s177, 1
        %s587 = smul.addr %s586, 8
        %s588 = scalar_lea.vmem [#allocation10], %s587
        // Predicated region
        $region45: #{tpu_custom_call.1} parent=35 // pred_check
          %p589 = pneg %p135
        $region46: #{tpu_custom_call.1} parent=35 // pred_check_branch
          %591 = sbr.rel (%p589) target = $region48
        $region47: #{tpu_custom_call.1} parent=35 // pred_region
          %s593 = ssub.s32 128, 128
          %594 = vsyncadd %s575, %s593
          %s595 = smul.addr %s28, 128
          %s596 = scalar_lea.hbm %s4, %s595
          %s598 = sshll.u32 %s578, 4
          %s599 = int_to_ptr.vmem [resolvable:$true] %s598
          %601 = dma.vmem_to_hbm [thread:$0]  %s599, 128, %s596, %s575
        $region48: #{tpu_custom_call.1} parent=35 // pred_fallthru
          _
        // Predicated region
        $region49: #{tpu_custom_call.1} parent=35 // pred_check
          %p602 = pneg %p161
        $region50: #{tpu_custom_call.1} parent=35 // pred_check_branch
          %604 = sbr.rel (%p602) target = $region52
        $region51: #{tpu_custom_call.1} parent=35 // pred_region
          %s606 = ssub.s32 128, 128
          %607 = vsyncadd %s580, %s606
          %s608 = smul.addr %s28, 128
          %s609 = scalar_lea.hbm %s5, %s608
          %s611 = sshll.u32 %s583, 4
          %s612 = int_to_ptr.vmem [resolvable:$true] %s611
          %614 = dma.vmem_to_hbm [thread:$0]  %s612, 128, %s609, %s580
        $region52: #{tpu_custom_call.1} parent=35 // pred_fallthru
          _
        // Predicated region
        $region53: #{tpu_custom_call.1} parent=35 // pred_check
          %p615 = pneg %p187
        $region54: #{tpu_custom_call.1} parent=35 // pred_check_branch
          %617 = sbr.rel (%p615) target = $region56
        $region55: #{tpu_custom_call.1} parent=35 // pred_region
          %s619 = ssub.s32 128, 128
          %620 = vsyncadd %s585, %s619
          %s621 = smul.addr %s28, 128
          %s622 = scalar_lea.hbm %s6, %s621
          %s624 = sshll.u32 %s588, 4
          %s625 = int_to_ptr.vmem [resolvable:$true] %s624
          %627 = dma.vmem_to_hbm [thread:$0]  %s625, 128, %s622, %s585
        $region56: #{tpu_custom_call.1} parent=35 // pred_fallthru
          _
      $region36: #{tpu_custom_call.1} parent=5 // pred_fallthru
        _
      %p628 = scmp.le.s32.totalorder 2, %s23
      // Predicated region
      $region57: #{tpu_custom_call.1} parent=5 // pred_check
        %p629 = pneg %p628
      $region58: #{tpu_custom_call.1} parent=5 // pred_check_branch
        %631 = sbr.rel (%p629) target = $region60
      $region59: #{tpu_custom_call.1} parent=5 // pred_region
        %s632 = ssub.s32 %s23, 2
        // Predicated region
        $region61: #{tpu_custom_call.1} parent=59 // pred_check
          %p633 = pneg %p141
        $region62: #{tpu_custom_call.1} parent=59 // pred_check_branch
          %635 = sbr.rel (%p633) target = $region64
        $region63: #{tpu_custom_call.1} parent=59 // pred_region
          %s636 = sand.u32 %s126, 1
          %s637 = scalar_lea.sflag [#allocation4], %s636
          %s638 = sand.u32 %s126, 1
          %s639 = smul.addr %s638, 8
          %s640 = scalar_lea.vmem [#allocation7], %s639
          %641 = dma.done %s637, 128
        $region64: #{tpu_custom_call.1} parent=59 // pred_fallthru
          _
        // Predicated region
        $region65: #{tpu_custom_call.1} parent=59 // pred_check
          %p642 = pneg %p167
        $region66: #{tpu_custom_call.1} parent=59 // pred_check_branch
          %644 = sbr.rel (%p642) target = $region68
        $region67: #{tpu_custom_call.1} parent=59 // pred_region
          %s645 = sand.u32 %s29, 1
          %s646 = scalar_lea.sflag [#allocation9], %s645
          %s647 = sand.u32 %s152, 1
          %s648 = smul.addr %s647, 8
          %s649 = scalar_lea.vmem [#allocation8], %s648
          %650 = dma.done %s646, 128
        $region68: #{tpu_custom_call.1} parent=59 // pred_fallthru
          _
        // Predicated region
        $region69: #{tpu_custom_call.1} parent=59 // pred_check
          %p651 = pneg %p193
        $region70: #{tpu_custom_call.1} parent=59 // pred_check_branch
          %653 = sbr.rel (%p651) target = $region72
        $region71: #{tpu_custom_call.1} parent=59 // pred_region
          %s654 = sand.u32 %s29, 1
          %s655 = scalar_lea.sflag [#allocation9], %s654
          %s656 = sand.u32 %s178, 1
          %s657 = smul.addr %s656, 8
          %s658 = scalar_lea.vmem [#allocation10], %s657
          %659 = dma.done %s655, 128
        $region72: #{tpu_custom_call.1} parent=59 // pred_fallthru
          _
      $region60: #{tpu_custom_call.1} parent=5 // pred_fallthru
        _
    $region6: #{tpu_custom_call.1} parent=1 // loop_footer
      %s27 = sadd.s32 1, %s23
    $region7: #{tpu_custom_call.1} parent=1 // loop_footer_branch
      %22 = sbr.rel target = $region3
    $region8: #{tpu_custom_call.1} parent=1 // loop_exit
      _
    %660 = vsyncpa [#allocation3], 1
    %s661 = scalar_lea.sflag [#allocation3], 1
    %662 = vsyncpa %s661, 1
    %663 = vsyncpa [#allocation6], 1
    %664 = vsyncpa [#allocation4], 1
    %s665 = scalar_lea.sflag [#allocation4], 1
    %666 = vsyncpa %s665, 1
    %667 = vsyncpa [#allocation9], 1
    %s668 = scalar_lea.sflag [#allocation9], 1
    %669 = vsyncpa %s668, 1

</llo_original>
